<compile_context>
chip_gen: v7x
topology: tpu7x:2x2x1
jax: 0.10.0
libtpu: 0.0.40
codegen_flags: <defaults>
</compile_context>

<pallas_src>
import functools

import jax
import jax.numpy as jnp
from jax.experimental import pallas as pl
from jax.experimental.pallas import tpu as pltpu

_IGNORE_INDEX = -100          # PyTorch NLLLoss default
_NEG_LARGE = -1e30            # mask/init value; assumes real logits > -1e30
_MAX_ROW_TILE = 1024
_SINGLE_TILE_V_MAX = 8192     # above this, tile the vocab axis (online logsumexp)
_VOCAB_TILE = 2048            # multiple of 128
_LANES = 128


def _round_up(a: int, b: int) -> int:
    return (a + b - 1) // b * b


def _detect_tpu():
    """Best-effort (vmem_capacity_bytes, is_v7x); safe fallbacks on any failure."""
    kind = ""
    try:
        kind = (jax.devices()[0].device_kind or "").lower()
    except Exception:
        pass
    is_v7x = ("v7" in kind) or ("tpu7" in kind) or ("7x" in kind)
    vmem = None
    try:
        vmem = int(pltpu.get_tpu_info().vmem_capacity_bytes)
    except Exception:
        vmem = None
    if vmem is None:
        vmem = (64 if is_v7x else 128) * 1024 * 1024
    return vmem, is_v7x


_VMEM_CAPACITY, _IS_V7X = _detect_tpu()

if _VMEM_CAPACITY >= 128 * 1024 * 1024 and not _IS_V7X:
    # v5e / v6e: 128 MiB physical VMEM -> bigger blocks amortize per-step overhead.
    _X_BUDGET_BYTES = 48 * 1024 * 1024
    _VMEM_LIMIT_BYTES = 96 * 1024 * 1024
else:
    # v7x (64 MiB physical VMEM per TensorCore) or unknown chip: stay conservative.
    _X_BUDGET_BYTES = 24 * 1024 * 1024
    _VMEM_LIMIT_BYTES = 48 * 1024 * 1024


def _choose_tiles(n_rows: int, v: int, itemsize: int, vocab_tile=None):
    if vocab_tile is not None:
        tv = _round_up(int(vocab_tile), _LANES)       # validate/round user tile
    elif v <= _SINGLE_TILE_V_MAX:
        tv = _round_up(v, _LANES)                     # full vocab, lane-dense
    else:
        tv = _VOCAB_TILE
    tv = min(tv, _round_up(v, _LANES))                # never wider than the vocab
    # Largest row tile (multiple of 8) whose double-buffered x block fits the budget.
    tm = _X_BUDGET_BYTES // (2 * tv * itemsize)
    tm = max(8, min(_MAX_ROW_TILE, (tm // 8) * 8))
    tm = min(tm, _round_up(n_rows, 8))                # don't over-pad tiny inputs
    return tm, tv


def _make_elmo_loss_kernel(tv: int, v_total: int):
    nsub = tv // _LANES
    rem = v_total % tv
    # Sub-blocks [0, full_sub) are fully in-range in every vocab tile (including the
    # ragged tail tile), so only sub-blocks >= full_sub need a runtime column mask.
    full_sub = nsub if rem == 0 else rem // _LANES

    def kernel(x_ref, y_ref, o_ref, m_ref, l_ref, t_ref):
        k = pl.program_id(1)                          # vocab-tile index (reduction axis)
        tm = m_ref.shape[0]

        @pl.when(k == 0)
        def _init():
            m_ref[...] = jnp.full(m_ref.shape, _NEG_LARGE, m_ref.dtype)  # running max
            l_ref[...] = jnp.zeros(l_ref.shape, l_ref.dtype)             # running exp-sum
            t_ref[...] = jnp.zeros(t_ref.shape, t_ref.dtype)             # target-logit pick

        lane = jax.lax.broadcasted_iota(jnp.int32, (tm, _LANES), 1)      # hoisted, reused
        y_loc = y_ref[...] - k * tv                   # (tm, 1): target column local to tile
        vlim = v_total - k * tv                       # scalar: #valid columns in this tile

        def load_block(j):
            xj = x_ref[:, j * _LANES:(j + 1) * _LANES].astype(jnp.float32)
            if j >= full_sub:                         # static: only the ragged tail
                xj = jnp.where(lane < vlim - j * _LANES, xj, _NEG_LARGE)
            return xj

        # Pass 1: per-lane-slot max over this tile (pure VPU, no cross-lane work).
        m_loc = load_block(0)
        for j in range(1, nsub):
            m_loc = jnp.maximum(m_loc, load_block(j))
        m_prev = m_ref[...]
        m_new = jnp.maximum(m_prev, m_loc)

        # Pass 2: per-lane-slot exp-sum + target-logit pick (re-load to bound liveness).
        x0 = load_block(0)
        s = jnp.exp(x0 - m_new)
        t = jnp.where(lane == y_loc, x0, 0.0)
        for j in range(1, nsub):
            xj = load_block(j)
            s = s + jnp.exp(xj - m_new)
            t = t + jnp.where(lane == y_loc - j * _LANES, xj, 0.0)

        l_ref[...] = l_ref[...] * jnp.exp(m_prev - m_new) + s
        t_ref[...] = t_ref[...] + t
        m_ref[...] = m_new

        @pl.when(k == pl.num_programs(1) - 1)
        def _finalize():
            m = m_ref[...]
            g_max = jnp.max(m, axis=-1, keepdims=True)                           # (tm, 1)
            g_sum = jnp.sum(l_ref[...] * jnp.exp(m - g_max), axis=-1, keepdims=True)
            tgt = jnp.sum(t_ref[...], axis=-1, keepdims=True)
            # per-row NLL = logsumexp(x) - x[target]
            o_ref[...] = g_max + jnp.log(g_sum) - tgt

    return kernel


@functools.partial(jax.jit, static_argnames=("vocab_tile",))
def elmo_loss(model_output: jax.Array, sample: jax.Array, vocab_tile=None) -> jax.Array:
    """model_output: (B, T, V) float (f32 or bf16); sample: (B, T) or (B, T, K) int."""
    if sample.ndim > 2:
        sample = sample[:, :, 0]
    B, T, V = model_output.shape
    N = B * T

    x = model_output.reshape(N, V)                    # no pads: ragged edges handled in-kernel
    y_flat = sample.reshape(N).astype(jnp.int32)

    tm, tv = _choose_tiles(N, V, x.dtype.itemsize, vocab_tile)
    grid = (pl.cdiv(N, tm), pl.cdiv(V, tv))

    if _IS_V7X and grid[0] >= 2 and hasattr(pltpu, "CORE_PARALLEL"):
        dim_sem = (pltpu.CORE_PARALLEL, pltpu.ARBITRARY)   # shard row tiles over both TCs
    else:
        dim_sem = ("parallel", "arbitrary")

    per_row = pl.pallas_call(
        _make_elmo_loss_kernel(tv, V),
        out_shape=jax.ShapeDtypeStruct((N, 1), jnp.float32),
        grid_spec=pltpu.PrefetchScalarGridSpec(
            num_scalar_prefetch=0,
            grid=grid,
            in_specs=[
                pl.BlockSpec((tm, tv), lambda i, k: (i, k)),
                pl.BlockSpec((tm, 1), lambda i, k: (i, 0)),
            ],
            out_specs=pl.BlockSpec((tm, 1), lambda i, k: (i, 0)),
            scratch_shapes=[pltpu.VMEM((tm, _LANES), jnp.float32)] * 3,
        ),
        compiler_params=pltpu.CompilerParams(
            dimension_semantics=dim_sem,
            vmem_limit_bytes=_VMEM_LIMIT_BYTES,
        ),
    )(x, y_flat.reshape(N, 1))

    nll = per_row[:, 0]
    valid = (y_flat != _IGNORE_INDEX).astype(jnp.float32)
    # Mean over non-ignored tokens (matches torch NLLLoss: NaN if everything is ignored).
    return jnp.sum(nll * valid) / jnp.sum(valid)


def _reference_loss(model_output, sample):
    if sample.ndim > 2:
        sample = sample[:, :, 0]
    logp = jax.nn.log_softmax(model_output.astype(jnp.float32), axis=-1)
    y = sample.astype(jnp.int32)
    valid = (y != _IGNORE_INDEX).astype(jnp.float32)
    y_safe = jnp.where(y == _IGNORE_INDEX, 0, y)
    picked = jnp.take_along_axis(logp, y_safe[..., None], axis=-1)[..., 0]
    return -(jnp.sum(picked * valid) / jnp.sum(valid))


if __name__ == "__main__":
    # Small shapes: batch=2, seq=8, vocab=32
    B, T, V = 2, 8, 32
    key = jax.random.PRNGKey(0)
    k1, k2 = jax.random.split(key)
    model_output = jax.random.normal(k1, (B, T, V), dtype=jnp.float32)
    sample = jax.random.randint(k2, (B, T), 0, V, dtype=jnp.int32)

    loss = jax.block_until_ready(elmo_loss(model_output, sample))
    ref = _reference_loss(model_output, sample)
    assert jnp.allclose(loss, ref, atol=1e-5, rtol=1e-5), (loss, ref)

    # bf16 input path (halves HBM traffic; kernel still computes in f32).
    loss_bf16 = jax.block_until_ready(elmo_loss(model_output.astype(jnp.bfloat16), sample))
    assert jnp.allclose(loss_bf16, ref, rtol=3e-2, atol=3e-2), (loss_bf16, ref)

    # Multi-vocab-tile (online logsumexp) path with a forced, aligned vocab tile.
    V2 = 256
    mo2 = jax.random.normal(k1, (B, T, V2), dtype=jnp.float32)
    s2 = jax.random.randint(k2, (B, T), 0, V2, dtype=jnp.int32)
    loss2 = jax.block_until_ready(elmo_loss(mo2, s2, vocab_tile=128))
    ref2 = _reference_loss(mo2, s2)
    assert jnp.allclose(loss2, ref2, atol=1e-5, rtol=1e-5), (loss2, ref2)

    # Ragged rows (N not multiple of 8), ragged vocab (V % 128 != 0) and an ignored label.
    B3, T3, V3 = 2, 5, 200
    mo3 = jax.random.normal(k1, (B3, T3, V3), dtype=jnp.float32)
    s3 = jax.random.randint(k2, (B3, T3), 0, V3, dtype=jnp.int32)
    s3 = s3.at[0, 0].set(_IGNORE_INDEX)
    loss3 = jax.block_until_ready(elmo_loss(mo3, s3, vocab_tile=128))
    ref3 = _reference_loss(mo3, s3)
    assert jnp.allclose(loss3, ref3, atol=1e-5, rtol=1e-5), (loss3, ref3)

    print("KERNEL_OK")
</pallas_src>

<mosaic_0001>
module attributes {stable_mosaic.version = 11 : i64} {
  func.func @kernel(%arg0: i32, %arg1: i32, %arg2: memref<16x128xf32, #tpu.memory_space<vmem>>, %arg3: memref<16x1xi32, #tpu.memory_space<vmem>>, %arg4: memref<16x1xf32, #tpu.memory_space<vmem>>, %arg5: memref<16x128xf32, #tpu.memory_space<vmem>>, %arg6: memref<16x128xf32, #tpu.memory_space<vmem>>, %arg7: memref<16x128xf32, #tpu.memory_space<vmem>>) attributes {dimension_semantics = [#tpu.dimension_semantics<parallel>, #tpu.dimension_semantics<arbitrary>], iteration_bounds = array<i64: 1, 1>, scalar_prefetch = 0 : i64, scratch_operands = 3 : i64, tpu.core_type = #tpu.core_type<tc>, window_params = [{transform_indices = @transform_0, window_bounds = array<i64: 16, 128>}, {transform_indices = @transform_1, window_bounds = array<i64: 16, 1>}, {transform_indices = @transform_2, window_bounds = array<i64: 16, 1>}]} {
    %c0_i32 = arith.constant 0 : i32
    %0 = arith.cmpi eq, %arg1, %c0_i32 : i32
    %1 = arith.extui %0 : i1 to i32
    %c0_i32_0 = arith.constant 0 : i32
    %2 = arith.cmpi ne, %1, %c0_i32_0 : i32
    scf.if %2 {
      %cst_25 = arith.constant -1.000000e+30 : f32
      %43 = vector.broadcast %cst_25 : f32 to vector<16x128xf32>
      %c0_26 = arith.constant 0 : index
      %c0_27 = arith.constant 0 : index
      %44 = vector.load %arg5[%c0_26, %c0_27] : memref<16x128xf32, #tpu.memory_space<vmem>>, vector<16x128xf32>
      tpu.vector_store %arg5[%c0_26, %c0_27], %43 {strides = array<i32>} : memref<16x128xf32, #tpu.memory_space<vmem>>, vector<16x128xf32>,
      %cst_28 = arith.constant 0.000000e+00 : f32
      %45 = vector.broadcast %cst_28 : f32 to vector<16x128xf32>
      %c0_29 = arith.constant 0 : index
      %c0_30 = arith.constant 0 : index
      %46 = vector.load %arg6[%c0_29, %c0_30] : memref<16x128xf32, #tpu.memory_space<vmem>>, vector<16x128xf32>
      tpu.vector_store %arg6[%c0_29, %c0_30], %45 {strides = array<i32>} : memref<16x128xf32, #tpu.memory_space<vmem>>, vector<16x128xf32>,
      %cst_31 = arith.constant 0.000000e+00 : f32
      %47 = vector.broadcast %cst_31 : f32 to vector<16x128xf32>
      %c0_32 = arith.constant 0 : index
      %c0_33 = arith.constant 0 : index
      %48 = vector.load %arg7[%c0_32, %c0_33] : memref<16x128xf32, #tpu.memory_space<vmem>>, vector<16x128xf32>
      tpu.vector_store %arg7[%c0_32, %c0_33], %47 {strides = array<i32>} : memref<16x128xf32, #tpu.memory_space<vmem>>, vector<16x128xf32>,
    } else {
    }
    %3 = tpu.iota {dimensions = array<i32: 1>} : vector<16x128xi32>
    %c0 = arith.constant 0 : index
    %c0_1 = arith.constant 0 : index
    %4 = vector.load %arg3[%c0, %c0_1] : memref<16x1xi32, #tpu.memory_space<vmem>>, vector<16x1xi32>
    %c128_i32 = arith.constant 128 : i32
    %5 = arith.muli %arg1, %c128_i32 : i32
    %6 = vector.broadcast %5 : i32 to vector<16x1xi32>
    %7 = arith.subi %4, %6 : vector<16x1xi32>
    %c128_i32_2 = arith.constant 128 : i32
    %8 = arith.muli %arg1, %c128_i32_2 : i32
    %c32_i32 = arith.constant 32 : i32
    %9 = arith.subi %c32_i32, %8 : i32
    %c0_3 = arith.constant 0 : index
    %c0_4 = arith.constant 0 : index
    %10 = vector.load %arg2[%c0_3, %c0_4] : memref<16x128xf32, #tpu.memory_space<vmem>>, vector<16x128xf32>
    %c0_i32_5 = arith.constant 0 : i32
    %11 = arith.subi %9, %c0_i32_5 : i32
    %12 = vector.broadcast %11 : i32 to vector<16x128xi32>
    %13 = arith.cmpi slt, %3, %12 : vector<16x128xi32>
    %cst = arith.constant -1.000000e+30 : f32
    %14 = vector.broadcast %cst : f32 to vector<16x128xf32>
    %15 = arith.select %13, %10, %14 : vector<16x128xi1>, vector<16x128xf32>
    %c0_6 = arith.constant 0 : index
    %c0_7 = arith.constant 0 : index
    %16 = vector.load %arg5[%c0_6, %c0_7] : memref<16x128xf32, #tpu.memory_space<vmem>>, vector<16x128xf32>
    %17 = arith.maximumf %16, %15 : vector<16x128xf32>
    %c0_8 = arith.constant 0 : index
    %c0_9 = arith.constant 0 : index
    %18 = vector.load %arg2[%c0_8, %c0_9] : memref<16x128xf32, #tpu.memory_space<vmem>>, vector<16x128xf32>
    %c0_i32_10 = arith.constant 0 : i32
    %19 = arith.subi %9, %c0_i32_10 : i32
    %20 = vector.broadcast %19 : i32 to vector<16x128xi32>
    %21 = arith.cmpi slt, %3, %20 : vector<16x128xi32>
    %cst_11 = arith.constant -1.000000e+30 : f32
    %22 = vector.broadcast %cst_11 : f32 to vector<16x128xf32>
    %23 = arith.select %21, %18, %22 : vector<16x128xi1>, vector<16x128xf32>
    %24 = arith.subf %23, %17 : vector<16x128xf32>
    %25 = math.exp %24 : vector<16x128xf32>
    %26 = vector.broadcast %7 : vector<16x1xi32> to vector<16x128xi32>
    %27 = arith.cmpi eq, %3, %26 : vector<16x128xi32>
    %cst_12 = arith.constant 0.000000e+00 : f32
    %28 = vector.broadcast %cst_12 : f32 to vector<16x128xf32>
    %29 = arith.select %27, %23, %28 : vector<16x128xi1>, vector<16x128xf32>
    %c0_13 = arith.constant 0 : index
    %c0_14 = arith.constant 0 : index
    %30 = vector.load %arg6[%c0_13, %c0_14] : memref<16x128xf32, #tpu.memory_space<vmem>>, vector<16x128xf32>
    %31 = arith.subf %16, %17 : vector<16x128xf32>
    %32 = math.exp %31 : vector<16x128xf32>
    %33 = arith.mulf %30, %32 : vector<16x128xf32>
    %34 = arith.addf %33, %25 : vector<16x128xf32>
    %c0_15 = arith.constant 0 : index
    %c0_16 = arith.constant 0 : index
    %35 = vector.load %arg6[%c0_15, %c0_16] : memref<16x128xf32, #tpu.memory_space<vmem>>, vector<16x128xf32>
    tpu.vector_store %arg6[%c0_15, %c0_16], %34 {strides = array<i32>} : memref<16x128xf32, #tpu.memory_space<vmem>>, vector<16x128xf32>,
    %c0_17 = arith.constant 0 : index
    %c0_18 = arith.constant 0 : index
    %36 = vector.load %arg7[%c0_17, %c0_18] : memref<16x128xf32, #tpu.memory_space<vmem>>, vector<16x128xf32>
    %37 = arith.addf %36, %29 : vector<16x128xf32>
    %c0_19 = arith.constant 0 : index
    %c0_20 = arith.constant 0 : index
    %38 = vector.load %arg7[%c0_19, %c0_20] : memref<16x128xf32, #tpu.memory_space<vmem>>, vector<16x128xf32>
    tpu.vector_store %arg7[%c0_19, %c0_20], %37 {strides = array<i32>} : memref<16x128xf32, #tpu.memory_space<vmem>>, vector<16x128xf32>,
    %c0_21 = arith.constant 0 : index
    %c0_22 = arith.constant 0 : index
    %39 = vector.load %arg5[%c0_21, %c0_22] : memref<16x128xf32, #tpu.memory_space<vmem>>, vector<16x128xf32>
    tpu.vector_store %arg5[%c0_21, %c0_22], %17 {strides = array<i32>} : memref<16x128xf32, #tpu.memory_space<vmem>>, vector<16x128xf32>,
    %c0_i32_23 = arith.constant 0 : i32
    %40 = arith.cmpi eq, %arg1, %c0_i32_23 : i32
    %41 = arith.extui %40 : i1 to i32
    %c0_i32_24 = arith.constant 0 : i32
    %42 = arith.cmpi ne, %41, %c0_i32_24 : i32
    scf.if %42 {
      %c0_25 = arith.constant 0 : index
      %c0_26 = arith.constant 0 : index
      %43 = vector.load %arg5[%c0_25, %c0_26] : memref<16x128xf32, #tpu.memory_space<vmem>>, vector<16x128xf32>
      %cst_27 = arith.constant dense<0xFF800000> : vector<16xf32>
      %44 = vector.multi_reduction <maximumf>, %43, %cst_27 [1] : vector<16x128xf32> to vector<16xf32>
      %45 = vector.shape_cast %44 : vector<16xf32> to vector<16x1xf32>
      %c0_28 = arith.constant 0 : index
      %c0_29 = arith.constant 0 : index
      %46 = vector.load %arg6[%c0_28, %c0_29] : memref<16x128xf32, #tpu.memory_space<vmem>>, vector<16x128xf32>
      %47 = vector.broadcast %45 : vector<16x1xf32> to vector<16x128xf32>
      %48 = arith.subf %43, %47 : vector<16x128xf32>
      %49 = math.exp %48 : vector<16x128xf32>
      %50 = arith.mulf %46, %49 : vector<16x128xf32>
      %cst_30 = arith.constant dense<0.000000e+00> : vector<16xf32>
      %51 = vector.multi_reduction <add>, %50, %cst_30 [1] : vector<16x128xf32> to vector<16xf32>
      %52 = vector.shape_cast %51 : vector<16xf32> to vector<16x1xf32>
      %c0_31 = arith.constant 0 : index
      %c0_32 = arith.constant 0 : index
      %53 = vector.load %arg7[%c0_31, %c0_32] : memref<16x128xf32, #tpu.memory_space<vmem>>, vector<16x128xf32>
      %cst_33 = arith.constant dense<0.000000e+00> : vector<16xf32>
      %54 = vector.multi_reduction <add>, %53, %cst_33 [1] : vector<16x128xf32> to vector<16xf32>
      %55 = vector.shape_cast %54 : vector<16xf32> to vector<16x1xf32>
      %56 = math.log %52 : vector<16x1xf32>
      %57 = arith.addf %45, %56 : vector<16x1xf32>
      %58 = arith.subf %57, %55 : vector<16x1xf32>
      %c0_34 = arith.constant 0 : index
      %c0_35 = arith.constant 0 : index
      %59 = vector.load %arg4[%c0_34, %c0_35] : memref<16x1xf32, #tpu.memory_space<vmem>>, vector<16x1xf32>
      tpu.vector_store %arg4[%c0_34, %c0_35], %58 {strides = array<i32>} : memref<16x1xf32, #tpu.memory_space<vmem>>, vector<16x1xf32>,
    } else {
    }
    return
  }
  func.func @transform_0(%arg0: i32, %arg1: i32) -> (i32, i32) {
    %c0_i32 = arith.constant 0 : i32
    return %arg0, %arg1 : i32, i32
  }
  func.func @transform_1(%arg0: i32, %arg1: i32) -> (i32, i32) {
    %c0_i32 = arith.constant 0 : i32
    %c0_i32_0 = arith.constant 0 : i32
    return %arg0, %c0_i32 : i32, i32
  }
  func.func @transform_2(%arg0: i32, %arg1: i32) -> (i32, i32) {
    %c0_i32 = arith.constant 0 : i32
    %c0_i32_0 = arith.constant 0 : i32
    return %arg0, %c0_i32 : i32, i32
  }
}

</mosaic_0001>

<llo_original>
// kernel: elmo_loss.1
$region0: #{elmo_loss.1}
  #allocation0 [shape = 'u32[]', space=smem, size = 0x4, offset = 0x4, fixed_abs, tag = 'smem constant byte address 0x4 - core index']
  #allocation1 [shape = 'u32[144,128]{1,0:T(1,128)}', space=vmem, size = 0x12000, scoped, tag = 'internal scratch']
  #allocation2 [shape = 'f32[16,128]{1,0:T(8,128)}', space=vmem, size = 0x2000, scoped, tag = 'scratch operand']
  #allocation3 [shape = 'f32[16,128]{1,0:T(8,128)}', space=vmem, size = 0x2000, scoped, tag = 'scratch operand']
  #allocation4 [shape = 'f32[16,128]{1,0:T(8,128)}', space=vmem, size = 0x2000, scoped, tag = 'scratch operand']
  %s0 = inlined_call_operand.hbm [shape: f32[16,32], index: 0, kind: input, shape index: {}]
  %s1 = inlined_call_operand.hbm [shape: s32[16,1], index: 1, kind: input, shape index: {}]
  %s2 = inlined_call_operand.hbm [shape: f32[16,1], index: 2, kind: output, shape index: {}]
  %s3 = sld [smem:[#allocation0]]
  $region34: #{elmo_loss.1} parent=0
    _
  %s5 = ssub.s32 1, %s3
  %s6 = scalar_select 0, %s5, %s3
  $region1: #{elmo_loss.1} parent=0
    #allocation5 [shape = 'u8[8192]{0}', space=vmem, size = 0x2000, scoped, tag = 'input window, operand 0, single buffered']
    #allocation6 [shape = 's32[1]{0}', space=sflag, size = 0x4, scoped, tag = 'scoped memory for elmo_loss.1']
    #allocation7 [shape = 's32[1]{0}', space=sflag, size = 0x4, scoped, tag = 'scoped memory for elmo_loss.1']
    #allocation8 [shape = 'u8[8192]{0}', space=vmem, size = 0x2000, scoped, tag = 'input window, operand 1, single buffered']
    #allocation9 [shape = 's32[1]{0}', space=sflag, size = 0x4, scoped, tag = 'scoped memory for elmo_loss.1']
    #allocation10 [shape = 'u8[8192]{0}', space=vmem, size = 0x2000, scoped, tag = 'output window, operand 0, single buffered']
    %7 = vsyncpa [#allocation6], 0
    %8 = vsyncpa [#allocation9], 0
    %9 = vsyncpa [#allocation7], 0
    // Predicated region
    $region2: #{elmo_loss.1} parent=1 // pred_check
      _
    $region3: #{elmo_loss.1} parent=1 // pred_check_branch
      %11 = sbr.rel (0) target = $region5
    $region4: #{elmo_loss.1} parent=1 // pred_region
      %s13 = ssub.s32 256, 256
      %14 = vsyncadd [#allocation6], %s13
      %s15 = sshll.u32 [#allocation5], 4
      %s16 = int_to_ptr.vmem [resolvable:$true] %s15
      %21 = dma.hbm_to_vmem [thread:$0]  %s0, 256, %s16, [#allocation6], 128, 128, 8
    $region5: #{elmo_loss.1} parent=1 // pred_fallthru
      _
    // Predicated region
    $region6: #{elmo_loss.1} parent=1 // pred_check
      _
    $region7: #{elmo_loss.1} parent=1 // pred_check_branch
      %23 = sbr.rel (0) target = $region9
    $region8: #{elmo_loss.1} parent=1 // pred_region
      %s25 = ssub.s32 256, 256
      %26 = vsyncadd [#allocation9], %s25
      %s27 = sshll.u32 [#allocation8], 4
      %s28 = int_to_ptr.vmem [resolvable:$true] %s27
      %33 = dma.hbm_to_vmem [thread:$0]  %s1, 256, %s28, [#allocation9], 128, 128, 8
    $region9: #{elmo_loss.1} parent=1 // pred_fallthru
      _
    // Predicated region
    $region10: #{elmo_loss.1} parent=1 // pred_check
      _
    $region11: #{elmo_loss.1} parent=1 // pred_check_branch
      %35 = sbr.rel (0) target = $region13
    $region12: #{elmo_loss.1} parent=1 // pred_region
      %36 = dma.done [#allocation6], 256
    $region13: #{elmo_loss.1} parent=1 // pred_fallthru
      _
    // Predicated region
    $region14: #{elmo_loss.1} parent=1 // pred_check
      _
    $region15: #{elmo_loss.1} parent=1 // pred_check_branch
      %38 = sbr.rel (0) target = $region17
    $region16: #{elmo_loss.1} parent=1 // pred_region
      %39 = dma.done [#allocation9], 256
    $region17: #{elmo_loss.1} parent=1 // pred_fallthru
      _
    %p40 = scmp.eq.s32.totalorder 0, 0
    // Predicated region
    $region18: #{elmo_loss.1} parent=1 // pred_check
      %p41 = pneg %p40
    $region19: #{elmo_loss.1} parent=1 // pred_check_branch
      %43 = sbr.rel (%p41) target = $region21
    $region20: #{elmo_loss.1} parent=1 // pred_region
      %44 = vst [vmem:[#allocation2] sm:$0xff] -1e+30
      %45 = vst [vmem:[#allocation2 + $0x8] sm:$0xff] -1e+30
      %46 = vst [vmem:[#allocation3] sm:$0xff] 0.0
      %47 = vst [vmem:[#allocation3 + $0x8] sm:$0xff] 0.0
      %48 = vst [vmem:[#allocation4] sm:$0xff] 0.0
      %49 = vst [vmem:[#allocation4 + $0x8] sm:$0xff] 0.0
    $region21: #{elmo_loss.1} parent=1 // pred_fallthru
      _
    %v50 = vlaneseq
    %v51 = vand.u32 %v50, 127
    %v52 = vld [vmem:[#allocation8] sm:$0xff]
    %v53 = vld [vmem:[#allocation8 + $0x8] sm:$0xff]
    %s54 = smul.u32 0, 128
    %v55 = vstv %s54
    %v56 = vsub.s32 %v52, %v55
    %v57 = vsub.s32 %v53, %v55
    %s58 = ssub.s32 32, %s54
    %v59 = vld [vmem:[#allocation5] sm:$0xff]
    %v60 = vld [vmem:[#allocation5 + $0x8] sm:$0xff]
    %v61 = vstv %s58
    %vm62 = vcmp.lt.s32.totalorder %v51, %v61
    %v63 = vsel %vm62, %v59, -1e+30
    %v64 = vsel %vm62, %v60, -1e+30
    %v65 = vld [vmem:[#allocation2] sm:$0xff]
    %v66 = vld [vmem:[#allocation2 + $0x8] sm:$0xff]
    %v67 = vmax.f32 %v65, %v63
    %v68 = vmax.f32 %v66, %v64
    %v69 = vsub.f32 %v63, %v67
    %v70 = vsub.f32 %v64, %v68
    %v71 = vmul.f32 %v69, 1.442695
    %v72 = vpow.pop %v71
    %v73 = vmul.f32 %v70, 1.442695
    %v74 = vpow.pop %v73
    %75 = vset.pattern.permute.xlu0 0
    %76 = vperm.xlu0 %75, %v56
    %v77 = vpop.permute.xlu0 %76
    %78 = vset.pattern.permute.xlu0 0
    %79 = vperm.xlu0 %78, %v57
    %v80 = vpop.permute.xlu0 %79
    %vm81 = vcmp.eq.s32.totalorder %v51, %v77
    %vm82 = vcmp.eq.s32.totalorder %v51, %v80
    %v83 = vsel %vm81, %v63, 0.0
    %v84 = vsel %vm82, %v64, 0.0
    %v85 = vld [vmem:[#allocation3] sm:$0xff]
    %v86 = vld [vmem:[#allocation3 + $0x8] sm:$0xff]
    %v87 = vsub.f32 %v65, %v67
    %v88 = vsub.f32 %v66, %v68
    %v89 = vmul.f32 %v87, 1.442695
    %v90 = vpow.pop %v89
    %v91 = vmul.f32 %v88, 1.442695
    %v92 = vpow.pop %v91
    %v93 = vmul.f32 %v85, %v90
    %v94 = vmul.f32 %v86, %v92
    %v95 = vadd.f32 %v93, %v72
    %v96 = vadd.f32 %v94, %v74
    %97 = vst [vmem:[#allocation3] sm:$0xff] %v95
    %98 = vst [vmem:[#allocation3 + $0x8] sm:$0xff] %v96
    %v99 = vld [vmem:[#allocation4] sm:$0xff]
    %v100 = vld [vmem:[#allocation4 + $0x8] sm:$0xff]
    %v101 = vadd.f32 %v99, %v83
    %v102 = vadd.f32 %v100, %v84
    %103 = vst [vmem:[#allocation4] sm:$0xff] %v101
    %104 = vst [vmem:[#allocation4 + $0x8] sm:$0xff] %v102
    %105 = vst [vmem:[#allocation2] sm:$0xff] %v67
    %106 = vst [vmem:[#allocation2 + $0x8] sm:$0xff] %v68
    // Predicated region
    $region22: #{elmo_loss.1} parent=1 // pred_check
      %p107 = pneg %p40
    $region23: #{elmo_loss.1} parent=1 // pred_check_branch
      %109 = sbr.rel (%p107) target = $region25
    $region24: #{elmo_loss.1} parent=1 // pred_region
      %v110 = vld [vmem:[#allocation2] sm:$0xff]
      %v111 = vld [vmem:[#allocation2 + $0x8] sm:$0xff]
      %112 = vmax.xlane.f32.xlu0 %v110
      %v113 = vpop.xlane.xlu0 %112
      %114 = vmax.xlane.f32.xlu0 %v111
      %v115 = vpop.xlane.xlu0 %114
      %v116 = vld [vmem:[#allocation3] sm:$0xff]
      %v117 = vld [vmem:[#allocation3 + $0x8] sm:$0xff]
      %v118 = vsub.f32 %v110, %v113
      %v119 = vsub.f32 %v111, %v115
      %v120 = vmul.f32 %v118, 1.442695
      %v121 = vpow.pop %v120
      %v122 = vmul.f32 %v119, 1.442695
      %v123 = vpow.pop %v122
      %v124 = vmul.f32 %v116, %v121
      %v125 = vmul.f32 %v117, %v123
      %126 = vadd.xlane.f32.xlu0 %v124
      %v127 = vpop.xlane.xlu0 %126
      %128 = vadd.xlane.f32.xlu0 %v125
      %v129 = vpop.xlane.xlu0 %128
      %v130 = vld [vmem:[#allocation4] sm:$0xff]
      %v131 = vld [vmem:[#allocation4 + $0x8] sm:$0xff]
      %132 = vadd.xlane.f32.xlu0 %v130
      %v133 = vpop.xlane.xlu0 %132
      %134 = vadd.xlane.f32.xlu0 %v131
      %v135 = vpop.xlane.xlu0 %134
      %v136 = vlog2.pop %v127
      %v137 = vmul.f32 %v136, 0.6931472
      %v138 = vlog2.pop %v129
      %v139 = vmul.f32 %v138, 0.6931472
      %v140 = vadd.f32 %v113, %v137
      %v141 = vadd.f32 %v115, %v139
      %v142 = vsub.f32 %v140, %v133
      %v143 = vsub.f32 %v141, %v135
      %vm144 = vcmask 7168
      %145 = vst.msk [vmem:[#allocation10] sm:$0xff] %vm144, %v142
      %146 = vst.msk [vmem:[#allocation10 + $0x8] sm:$0xff] %vm144, %v143
    $region25: #{elmo_loss.1} parent=1 // pred_fallthru
      _
    // Predicated region
    $region26: #{elmo_loss.1} parent=1 // pred_check
      _
    $region27: #{elmo_loss.1} parent=1 // pred_check_branch
      %148 = sbr.rel (0) target = $region29
    $region28: #{elmo_loss.1} parent=1 // pred_region
      %s150 = ssub.s32 256, 256
      %151 = vsyncadd [#allocation7], %s150
      %s152 = sshll.u32 [#allocation10], 4
      %s153 = int_to_ptr.vmem [resolvable:$true] %s152
      %158 = dma.vmem_to_hbm [thread:$0]  %s153, 256, %s2, [#allocation7], 128, 128, 8
    $region29: #{elmo_loss.1} parent=1 // pred_fallthru
      _
    // Predicated region
    $region30: #{elmo_loss.1} parent=1 // pred_check
      _
    $region31: #{elmo_loss.1} parent=1 // pred_check_branch
      %160 = sbr.rel (0) target = $region33
    $region32: #{elmo_loss.1} parent=1 // pred_region
      %161 = dma.done [#allocation7], 256
    $region33: #{elmo_loss.1} parent=1 // pred_fallthru
      _
    %162 = vsyncpa [#allocation6], 1
    %163 = vsyncpa [#allocation9], 1
    %164 = vsyncpa [#allocation7], 1

</llo_original>
